<compile_context>
chip_gen: v7x
topology: tpu7x:2x2x1
jax: 0.10.0
libtpu: 0.0.40
codegen_flags: <defaults>
</compile_context>

<pallas_src>
import functools
import math

import jax
import jax.numpy as jnp
from jax.experimental import pallas as pl
from jax.experimental.pallas import tpu as pltpu


def _round_up(x: int, m: int) -> int:
    return ((x + m - 1) // m) * m


def _round_down(x: int, m: int) -> int:
    return (x // m) * m


def _vmem_limit_bytes() -> int:
    """Scoped-VMEM limit to request, derived from the chip's physical VMEM.
    v5e/v6e (128 MiB): 64 MiB.  v7x (64 MiB per TC): 48 MiB.  Fallback: 48 MiB."""
    try:
        cap = int(pltpu.get_tpu_info().vmem_capacity_bytes)
    except Exception:  # pragma: no cover - conservative fallback
        cap = 64 << 20
    return max(16 << 20, min((cap * 3) // 4, 64 << 20))


# --------------------------------------------------------------------------
# Single-pass kernel: one (TN, D) block holds full rows.
# --------------------------------------------------------------------------
def _layernorm_row_kernel(x_ref, gamma_ref, beta_ref, o_ref, *, eps, d_valid):
    # x_ref: (TN, D) VMEM tile; gamma_ref/beta_ref: (1, D) resident rows.
    x = x_ref[...].astype(jnp.float32)

    # Center-then-square: numerically stable (no cancellation) and the extra
    # elementwise pass over the in-VMEM tile is free on a memory-bound kernel.
    mean = jnp.sum(x, axis=1, keepdims=True) * (1.0 / d_valid)          # (TN, 1)
    xc = x - mean
    denom = (d_valid - 1.0) if d_valid > 1 else 1.0                     # unbiased
    var = jnp.sum(xc * xc, axis=1, keepdims=True) * (1.0 / denom)       # (TN, 1)

    # One reciprocal per row, then a plain VPU multiply (eps added to std,
    # matching the PyTorch module).
    rinv = pl.reciprocal(jnp.sqrt(var) + eps, approx=False)

    y = xc * rinv
    y = gamma_ref[...].astype(jnp.float32) * y + beta_ref[...].astype(jnp.float32)
    o_ref[...] = y.astype(o_ref.dtype)


# --------------------------------------------------------------------------
# Two-pass fallback for huge D: (1) D-tiled stats, (2) D-tiled normalize.
# --------------------------------------------------------------------------
def _stats_kernel(x_ref, mean_ref, rinv_ref, *, eps, d_valid, d_block):
    # grid = (row_tiles, d_tiles); reduction axis (k) is last / "arbitrary".
    # mean_ref / rinv_ref are (TN, 1) resident outputs used as s1/s2
    # accumulators until the final k step.
    k = pl.program_id(1)

    @pl.when(k == 0)
    def _():
        mean_ref[...] = jnp.zeros_like(mean_ref)
        rinv_ref[...] = jnp.zeros_like(rinv_ref)

    x = x_ref[...].astype(jnp.float32)
    # Mask the ragged tail of the last D block: the stale VMEM data beyond the
    # array boundary must not leak into the sums.
    col = jax.lax.broadcasted_iota(jnp.int32, x.shape, 1) + k * d_block
    x = jnp.where(col < d_valid, x, 0.0)

    mean_ref[...] += jnp.sum(x, axis=1, keepdims=True)       # running s1
    rinv_ref[...] += jnp.sum(x * x, axis=1, keepdims=True)   # running s2

    @pl.when(k == pl.num_programs(1) - 1)
    def _():
        s1 = mean_ref[...]
        s2 = rinv_ref[...]
        mean = s1 * (1.0 / d_valid)
        denom = (d_valid - 1.0) if d_valid > 1 else 1.0
        # One-pass moments over HBM-sized rows; clamp guards cancellation.
        var = jnp.maximum((s2 - s1 * mean) * (1.0 / denom), 0.0)
        mean_ref[...] = mean
        rinv_ref[...] = pl.reciprocal(jnp.sqrt(var) + eps, approx=False)


def _normalize_kernel(x_ref, mean_ref, rinv_ref, gamma_ref, beta_ref, o_ref):
    x = x_ref[...].astype(jnp.float32)
    y = (x - mean_ref[...]) * rinv_ref[...]
    y = gamma_ref[...].astype(jnp.float32) * y + beta_ref[...].astype(jnp.float32)
    o_ref[...] = y.astype(o_ref.dtype)


# --------------------------------------------------------------------------
# Wrapper
# --------------------------------------------------------------------------
def layer_norm_pallas(x, gamma, beta, eps=1e-5, *,
                      force_two_pass=False, row_block=None, d_block=None):
    """x: (N, C, *spatial); gamma, beta: (C,). Returns array shaped like x.
    row_block / d_block / force_two_pass are tuning & test overrides."""
    orig_shape = x.shape
    n = orig_shape[0]
    c = orig_shape[1]
    d = math.prod(orig_shape[1:])
    spatial = d // c

    # Flatten samples to rows; broadcast per-channel affine params to one
    # (1, D) row each so the kernel's affine step is a pure elementwise FMA.
    x2 = x.reshape(n, d)
    gamma_row = jnp.broadcast_to(
        gamma.astype(jnp.float32)[:, None], (c, spatial)).reshape(1, d)
    beta_row = jnp.broadcast_to(
        beta.astype(jnp.float32)[:, None], (c, spatial)).reshape(1, d)

    itemsize = jnp.dtype(x2.dtype).itemsize
    vmem_limit = _vmem_limit_bytes()
    usable = vmem_limit - (4 << 20)          # headroom: gamma/beta, Mosaic scratch
    target_block_bytes = 8 << 20             # ~8 MiB raw per input block
    # Live VMEM per block element: 2x double-buffered input + 2x output
    # (itemsize each) + ~3 fp32-wide temporaries (upcast x, centered x, y).
    cost_per_elem = 4 * itemsize + 3 * 4

    min_rows = min(n, 8)
    rows_budget = usable // max(1, d * cost_per_elem)
    two_pass = force_two_pass or rows_budget < min_rows

    if not two_pass:
        # ---------------- single-pass path: whole rows per block ----------------
        if row_block is not None:
            tn = row_block
        else:
            rows = min(rows_budget, max(target_block_bytes // (d * itemsize), 8))
            if n >= 16:
                # Guarantee >= 2 grid programs so "parallel" shards across both
                # TensorCores on v7x (no-op on single-TC v5e/v6e).
                rows = min(rows, _round_up(pl.cdiv(n, 2), 8))
            tn = n if rows >= n else max(_round_down(rows, 8), 8)

        grid = (pl.cdiv(n, tn),)
        kernel = functools.partial(_layernorm_row_kernel,
                                   eps=float(eps), d_valid=d)
        out2 = pl.pallas_call(
            kernel,
            out_shape=jax.ShapeDtypeStruct((n, d), x2.dtype),
            grid_spec=pltpu.PrefetchScalarGridSpec(
                num_scalar_prefetch=0,
                grid=grid,
                in_specs=[
                    pl.BlockSpec((tn, d), lambda i: (i, 0)),   # x rows (pipelined)
                    pl.BlockSpec((1, d), lambda i: (0, 0)),    # gamma row (resident)
                    pl.BlockSpec((1, d), lambda i: (0, 0)),    # beta row (resident)
                ],
                out_specs=pl.BlockSpec((tn, d), lambda i: (i, 0)),
            ),
            compiler_params=pltpu.CompilerParams(
                dimension_semantics=("parallel",),
                vmem_limit_bytes=vmem_limit),
        )(x2, gamma_row, beta_row)
        return out2.reshape(orig_shape)

    # ---------------- two-pass fallback: D-tiled stats + normalize ----------------
    tn = 8 if n >= 8 else n
    if d_block is None:
        td = usable // max(1, tn * cost_per_elem)
        td = min(td, target_block_bytes // max(1, tn * itemsize))
        td = max(_round_down(td, 128), 128)
    else:
        td = d_block
    if td >= d:
        td = d
    grid = (pl.cdiv(n, tn), pl.cdiv(d, td))

    stats = functools.partial(_stats_kernel, eps=float(eps), d_valid=d, d_block=td)
    mean, rinv = pl.pallas_call(
        stats,
        out_shape=(jax.ShapeDtypeStruct((n, 1), jnp.float32),
                   jax.ShapeDtypeStruct((n, 1), jnp.float32)),
        grid_spec=pltpu.PrefetchScalarGridSpec(
            num_scalar_prefetch=0,
            grid=grid,
            in_specs=[pl.BlockSpec((tn, td), lambda i, k: (i, k))],
            out_specs=[pl.BlockSpec((tn, 1), lambda i, k: (i, 0)),
                       pl.BlockSpec((tn, 1), lambda i, k: (i, 0))],
        ),
        compiler_params=pltpu.CompilerParams(
            dimension_semantics=("parallel", "arbitrary"),
            vmem_limit_bytes=vmem_limit),
    )(x2)

    out2 = pl.pallas_call(
        _normalize_kernel,
        out_shape=jax.ShapeDtypeStruct((n, d), x2.dtype),
        grid_spec=pltpu.PrefetchScalarGridSpec(
            num_scalar_prefetch=0,
            grid=grid,
            in_specs=[
                pl.BlockSpec((tn, td), lambda i, k: (i, k)),   # x tile
                pl.BlockSpec((tn, 1), lambda i, k: (i, 0)),    # mean
                pl.BlockSpec((tn, 1), lambda i, k: (i, 0)),    # 1/(std+eps)
                pl.BlockSpec((1, td), lambda i, k: (0, k)),    # gamma slice
                pl.BlockSpec((1, td), lambda i, k: (0, k)),    # beta slice
            ],
            out_specs=pl.BlockSpec((tn, td), lambda i, k: (i, k)),
        ),
        compiler_params=pltpu.CompilerParams(
            dimension_semantics=("parallel", "parallel"),
            vmem_limit_bytes=vmem_limit),
    )(x2, mean, rinv, gamma_row, beta_row)
    return out2.reshape(orig_shape)


# --------------------------------------------------------------------------
# Pure-JAX reference of the PyTorch forward (unbiased std, eps outside sqrt).
# --------------------------------------------------------------------------
def _layer_norm_ref(x, gamma, beta, eps):
    n = x.shape[0]
    xf = x.reshape(n, -1).astype(jnp.float32)
    mean = xf.mean(axis=1)
    var = jnp.sum((xf - mean[:, None]) ** 2, axis=1) / (xf.shape[1] - 1)
    std = jnp.sqrt(var)
    bshape = (n,) + (1,) * (x.ndim - 1)
    y = (x - mean.reshape(bshape)) / (std.reshape(bshape) + eps)
    pshape = (1, -1) + (1,) * (x.ndim - 2)
    return gamma.reshape(pshape) * y + beta.reshape(pshape)


if __name__ == "__main__":
    key = jax.random.PRNGKey(0)
    k_x, k_g, k_x2 = jax.random.split(key, 3)

    N, C, H, W = 2, 4, 16, 16
    x = jax.random.normal(k_x, (N, C, H, W), dtype=jnp.float32)
    # nn.Parameter shapes: gamma ~ U[0,1) of shape (C,), beta = zeros(C)
    gamma = jax.random.uniform(k_g, (C,), dtype=jnp.float32)
    beta = jnp.zeros((C,), dtype=jnp.float32)
    eps = 1e-5

    ref = _layer_norm_ref(x, gamma, beta, eps)

    # 1) Default single-pass path (full rows per block, no pad/slice copies).
    y = jax.block_until_ready(layer_norm_pallas(x, gamma, beta, eps))
    assert jnp.allclose(y, ref, atol=1e-5, rtol=1e-5), "single-pass mismatch"

    # 2) Two-pass (D-tiled) fallback, forced at this small shape so the ragged
    #    last D block and its in-kernel masking are exercised (1024/384 -> 3).
    y2 = jax.block_until_ready(
        layer_norm_pallas(x, gamma, beta, eps, force_two_pass=True, d_block=384))
    assert jnp.allclose(y2, ref, atol=1e-5, rtol=1e-5), "two-pass mismatch"

    # 3) Ragged batch edge on the single-pass path (N=10, TN=8 -> 2 programs,
    #    last block partially valid; writeback masking keeps it correct).
    x3 = jax.random.normal(k_x2, (10, C, H, W), dtype=jnp.float32)
    ref3 = _layer_norm_ref(x3, gamma, beta, eps)
    y3 = jax.block_until_ready(layer_norm_pallas(x3, gamma, beta, eps, row_block=8))
    assert jnp.allclose(y3, ref3, atol=1e-5, rtol=1e-5), "ragged-batch mismatch"

    print("KERNEL_OK")
</pallas_src>

<mosaic_0001>
module attributes {stable_mosaic.version = 11 : i64} {
  func.func @_layernorm_row_kernel(%arg0: i32, %arg1: memref<2x1024xf32, #tpu.memory_space<vmem>>, %arg2: memref<1x1024xf32, #tpu.memory_space<vmem>>, %arg3: memref<1x1024xf32, #tpu.memory_space<vmem>>, %arg4: memref<2x1024xf32, #tpu.memory_space<vmem>>) attributes {dimension_semantics = [#tpu.dimension_semantics<parallel>], iteration_bounds = array<i64: 1>, scalar_prefetch = 0 : i64, scratch_operands = 0 : i64, tpu.core_type = #tpu.core_type<tc>, window_params = [{transform_indices = @transform_0, window_bounds = array<i64: 2, 1024>}, {pipeline_mode = #tpu.pipeline_mode<synchronous>, transform_indices = @transform_1, window_bounds = array<i64: 1, 1024>}, {pipeline_mode = #tpu.pipeline_mode<synchronous>, transform_indices = @transform_2, window_bounds = array<i64: 1, 1024>}, {transform_indices = @transform_3, window_bounds = array<i64: 2, 1024>}]} {
    %c0 = arith.constant 0 : index
    %c0_0 = arith.constant 0 : index
    %0 = vector.load %arg1[%c0, %c0_0] : memref<2x1024xf32, #tpu.memory_space<vmem>>, vector<2x1024xf32>
    %cst = arith.constant dense<0.000000e+00> : vector<2xf32>
    %1 = vector.multi_reduction <add>, %0, %cst [1] : vector<2x1024xf32> to vector<2xf32>
    %2 = vector.shape_cast %1 : vector<2xf32> to vector<2x1xf32>
    %cst_1 = arith.constant 9.765625E-4 : f32
    %3 = vector.broadcast %cst_1 : f32 to vector<2x1xf32>
    %4 = arith.mulf %2, %3 : vector<2x1xf32>
    %5 = vector.broadcast %4 : vector<2x1xf32> to vector<2x1024xf32>
    %6 = arith.subf %0, %5 : vector<2x1024xf32>
    %7 = arith.mulf %6, %6 : vector<2x1024xf32>
    %cst_2 = arith.constant dense<0.000000e+00> : vector<2xf32>
    %8 = vector.multi_reduction <add>, %7, %cst_2 [1] : vector<2x1024xf32> to vector<2xf32>
    %9 = vector.shape_cast %8 : vector<2xf32> to vector<2x1xf32>
    %cst_3 = arith.constant 9.77517105E-4 : f32
    %10 = vector.broadcast %cst_3 : f32 to vector<2x1xf32>
    %11 = arith.mulf %9, %10 : vector<2x1xf32>
    %12 = math.sqrt %11 : vector<2x1xf32>
    %cst_4 = arith.constant 9.99999974E-6 : f32
    %13 = vector.broadcast %cst_4 : f32 to vector<2x1xf32>
    %14 = arith.addf %12, %13 : vector<2x1xf32>
    %15 = tpu.reciprocal %14 : vector<2x1xf32> -> vector<2x1xf32>
    %16 = vector.broadcast %15 : vector<2x1xf32> to vector<2x1024xf32>
    %17 = arith.mulf %6, %16 : vector<2x1024xf32>
    %c0_5 = arith.constant 0 : index
    %c0_6 = arith.constant 0 : index
    %18 = vector.load %arg2[%c0_5, %c0_6] : memref<1x1024xf32, #tpu.memory_space<vmem>>, vector<1x1024xf32>
    %19 = vector.broadcast %18 : vector<1x1024xf32> to vector<2x1024xf32>
    %20 = arith.mulf %19, %17 : vector<2x1024xf32>
    %c0_7 = arith.constant 0 : index
    %c0_8 = arith.constant 0 : index
    %21 = vector.load %arg3[%c0_7, %c0_8] : memref<1x1024xf32, #tpu.memory_space<vmem>>, vector<1x1024xf32>
    %22 = vector.broadcast %21 : vector<1x1024xf32> to vector<2x1024xf32>
    %23 = arith.addf %20, %22 : vector<2x1024xf32>
    %c0_9 = arith.constant 0 : index
    %c0_10 = arith.constant 0 : index
    %24 = vector.load %arg4[%c0_9, %c0_10] : memref<2x1024xf32, #tpu.memory_space<vmem>>, vector<2x1024xf32>
    tpu.vector_store %arg4[%c0_9, %c0_10], %23 {strides = array<i32>} : memref<2x1024xf32, #tpu.memory_space<vmem>>, vector<2x1024xf32>,
    return
  }
  func.func @transform_0(%arg0: i32) -> (i32, i32) {
    %c0_i32 = arith.constant 0 : i32
    %c0_i32_0 = arith.constant 0 : i32
    return %arg0, %c0_i32 : i32, i32
  }
  func.func @transform_1(%arg0: i32) -> (i32, i32) {
    %c0_i32 = arith.constant 0 : i32
    %c0_i32_0 = arith.constant 0 : i32
    %c0_i32_1 = arith.constant 0 : i32
    return %c0_i32, %c0_i32_0 : i32, i32
  }
  func.func @transform_2(%arg0: i32) -> (i32, i32) {
    %c0_i32 = arith.constant 0 : i32
    %c0_i32_0 = arith.constant 0 : i32
    %c0_i32_1 = arith.constant 0 : i32
    return %c0_i32, %c0_i32_0 : i32, i32
  }
  func.func @transform_3(%arg0: i32) -> (i32, i32) {
    %c0_i32 = arith.constant 0 : i32
    %c0_i32_0 = arith.constant 0 : i32
    return %arg0, %c0_i32 : i32, i32
  }
}

</mosaic_0001>

<llo_original>
// kernel: tpu_custom_call.1
$region0: #{tpu_custom_call.1}
  #allocation0 [shape = 'u32[]', space=smem, size = 0x4, offset = 0x4, fixed_abs, tag = 'smem constant byte address 0x4 - core index']
  #allocation1 [shape = 'u32[144,128]{1,0:T(1,128)}', space=vmem, size = 0x12000, scoped, tag = 'internal scratch']
  %s0 = inlined_call_operand.hbm [shape: f32[2,1024], index: 0, kind: input, shape index: {}]
  %s1 = inlined_call_operand.hbm [shape: f32[1,1024], index: 1, kind: input, shape index: {}]
  %s2 = inlined_call_operand.hbm [shape: f32[1,1024], index: 2, kind: input, shape index: {}]
  %s3 = inlined_call_operand.hbm [shape: f32[2,1024], index: 3, kind: output, shape index: {}]
  %s4 = sld [smem:[#allocation0]]
  $region34: #{tpu_custom_call.1} parent=0
    _
  %s6 = ssub.s32 1, %s4
  %s7 = scalar_select 0, %s6, %s4
  $region1: #{tpu_custom_call.1} parent=0
    #allocation2 [shape = 'u8[8192]{0}', space=vmem, size = 0x2000, scoped, tag = 'input window, operand 0, single buffered']
    #allocation3 [shape = 's32[1]{0}', space=sflag, size = 0x4, scoped, tag = 'scoped memory for tpu_custom_call.1']
    #allocation4 [shape = 's32[1]{0}', space=sflag, size = 0x4, scoped, tag = 'scoped memory for tpu_custom_call.1']
    #allocation5 [shape = 'u8[4096]{0}', space=vmem, size = 0x1000, scoped, tag = 'input window, operand 1, single buffered']
    #allocation6 [shape = 's32[1]{0}', space=sflag, size = 0x4, scoped, tag = 'scoped memory for tpu_custom_call.1']
    #allocation7 [shape = 'u8[4096]{0}', space=vmem, size = 0x1000, scoped, tag = 'input window, operand 2, single buffered']
    #allocation8 [shape = 'u8[8192]{0}', space=vmem, size = 0x2000, scoped, tag = 'output window, operand 0, single buffered']
    %8 = vsyncpa [#allocation3], 0
    %9 = vsyncpa [#allocation6], 0
    %10 = vsyncpa [#allocation4], 0
    // Predicated region
    $region2: #{tpu_custom_call.1} parent=1 // pred_check
      _
    $region3: #{tpu_custom_call.1} parent=1 // pred_check_branch
      %12 = sbr.rel (0) target = $region5
    $region4: #{tpu_custom_call.1} parent=1 // pred_region
      %s14 = ssub.s32 256, 256
      %15 = vsyncadd [#allocation3], %s14
      %s17 = sshll.u32 [#allocation2], 4
      %s18 = int_to_ptr.vmem [resolvable:$true] %s17
      %20 = dma.hbm_to_vmem [thread:$0]  %s0, 256, %s18, [#allocation3]
    $region5: #{tpu_custom_call.1} parent=1 // pred_fallthru
      _
    // Predicated region
    $region6: #{tpu_custom_call.1} parent=1 // pred_check
      _
    $region7: #{tpu_custom_call.1} parent=1 // pred_check_branch
      %22 = sbr.rel (0) target = $region9
    $region8: #{tpu_custom_call.1} parent=1 // pred_region
      %s24 = ssub.s32 128, 128
      %25 = vsyncadd [#allocation6], %s24
      %s27 = sshll.u32 [#allocation5], 4
      %s28 = int_to_ptr.vmem [resolvable:$true] %s27
      %30 = dma.hbm_to_vmem [thread:$0]  %s1, 128, %s28, [#allocation6]
    $region9: #{tpu_custom_call.1} parent=1 // pred_fallthru
      _
    // Predicated region
    $region10: #{tpu_custom_call.1} parent=1 // pred_check
      _
    $region11: #{tpu_custom_call.1} parent=1 // pred_check_branch
      %32 = sbr.rel (0) target = $region13
    $region12: #{tpu_custom_call.1} parent=1 // pred_region
      %s34 = ssub.s32 128, 128
      %35 = vsyncadd [#allocation6], %s34
      %s37 = sshll.u32 [#allocation7], 4
      %s38 = int_to_ptr.vmem [resolvable:$true] %s37
      %40 = dma.hbm_to_vmem [thread:$0]  %s2, 128, %s38, [#allocation6]
    $region13: #{tpu_custom_call.1} parent=1 // pred_fallthru
      _
    // Predicated region
    $region14: #{tpu_custom_call.1} parent=1 // pred_check
      _
    $region15: #{tpu_custom_call.1} parent=1 // pred_check_branch
      %42 = sbr.rel (0) target = $region17
    $region16: #{tpu_custom_call.1} parent=1 // pred_region
      %43 = dma.done [#allocation3], 256
    $region17: #{tpu_custom_call.1} parent=1 // pred_fallthru
      _
    // Predicated region
    $region18: #{tpu_custom_call.1} parent=1 // pred_check
      _
    $region19: #{tpu_custom_call.1} parent=1 // pred_check_branch
      %45 = sbr.rel (0) target = $region21
    $region20: #{tpu_custom_call.1} parent=1 // pred_region
      %46 = dma.done [#allocation6], 128
    $region21: #{tpu_custom_call.1} parent=1 // pred_fallthru
      _
    // Predicated region
    $region22: #{tpu_custom_call.1} parent=1 // pred_check
      _
    $region23: #{tpu_custom_call.1} parent=1 // pred_check_branch
      %48 = sbr.rel (0) target = $region25
    $region24: #{tpu_custom_call.1} parent=1 // pred_region
      %49 = dma.done [#allocation6], 128
    $region25: #{tpu_custom_call.1} parent=1 // pred_fallthru
      _
    %v50 = vld [vmem:[#allocation2] sm:$0xff]
    %v51 = vld [vmem:[#allocation2 + $0x8] sm:$0xff]
    %v54 = vcombine.high %v50, %v50
    %v56 = vunpack.c.l.s4 1983009808
    %v57 = vunpack.c.0.s8 %v56
    %v58 = vlaneseq
    %v59 = vshrl.u32 %v58, 7
    %v60 = vsub.s32 %v57, %v59
    %v61 = vrot.slane %v50, %v60
    %v63 = vunpack.c.l.s4 1983009808
    %v64 = vunpack.c.0.s8 %v63
    %v65 = vlaneseq
    %v66 = vshrl.u32 %v65, 7
    %v67 = vsub.s32 %v64, %v66
    %v68 = vrot.slane %v54, %v67
    %v69 = vcombine.high %v61, %v61
    %v70 = vcombine.high %v68, %v68
    %v71 = vcombine.high %v51, %v51
    %v73 = vunpack.c.l.s4 1983009808
    %v74 = vunpack.c.0.s8 %v73
    %v75 = vlaneseq
    %v76 = vshrl.u32 %v75, 7
    %v77 = vsub.s32 %v74, %v76
    %v78 = vrot.slane %v51, %v77
    %v80 = vunpack.c.l.s4 1983009808
    %v81 = vunpack.c.0.s8 %v80
    %v82 = vlaneseq
    %v83 = vshrl.u32 %v82, 7
    %v84 = vsub.s32 %v81, %v83
    %v85 = vrot.slane %v71, %v84
    %v86 = vcombine.high %v78, %v78
    %v87 = vcombine.high %v85, %v85
    %vm96 = vcmask 1041408
    %v97 = vsel %vm96, %v61, 0.0
    %v98 = vsel %vm96, %v69, 0.0
    %v99 = vadd.f32 %v97, %v98
    %v100 = vsel %vm96, %v68, 0.0
    %v101 = vadd.f32 %v99, %v100
    %v102 = vsel %vm96, %v70, 0.0
    %v103 = vadd.f32 %v101, %v102
    %v104 = vsel %vm96, %v78, 0.0
    %v105 = vadd.f32 %v103, %v104
    %v106 = vsel %vm96, %v86, 0.0
    %v107 = vadd.f32 %v105, %v106
    %v108 = vsel %vm96, %v85, 0.0
    %v109 = vadd.f32 %v107, %v108
    %v110 = vsel %vm96, %v87, 0.0
    %v111 = vadd.f32 %v109, %v110
    %112 = vadd.xlane.f32.xlu0 %v111
    %v113 = vpop.xlane.xlu0 %112
    %v114 = vmul.f32 %v113, 0.0009765625
    %v117 = vunpack.c.l.s4 269488144
    %v118 = vunpack.c.0.s8 %v117
    %v119 = vlaneseq
    %v120 = vshrl.u32 %v119, 7
    %v121 = vsub.s32 %v118, %v120
    %v122 = vrot.slane %v114, %v121
    %v124 = vsub.f32 %v50, %v122
    %v125 = vsub.f32 %v51, %v122
    %v126 = vmul.f32 %v124, %v124
    %v127 = vmul.f32 %v125, %v125
    %v130 = vcombine.high %v126, %v126
    %v132 = vunpack.c.l.s4 1983009808
    %v133 = vunpack.c.0.s8 %v132
    %v134 = vlaneseq
    %v135 = vshrl.u32 %v134, 7
    %v136 = vsub.s32 %v133, %v135
    %v137 = vrot.slane %v126, %v136
    %v139 = vunpack.c.l.s4 1983009808
    %v140 = vunpack.c.0.s8 %v139
    %v141 = vlaneseq
    %v142 = vshrl.u32 %v141, 7
    %v143 = vsub.s32 %v140, %v142
    %v144 = vrot.slane %v130, %v143
    %v145 = vcombine.high %v137, %v137
    %v146 = vcombine.high %v144, %v144
    %v147 = vcombine.high %v127, %v127
    %v149 = vunpack.c.l.s4 1983009808
    %v150 = vunpack.c.0.s8 %v149
    %v151 = vlaneseq
    %v152 = vshrl.u32 %v151, 7
    %v153 = vsub.s32 %v150, %v152
    %v154 = vrot.slane %v127, %v153
    %v156 = vunpack.c.l.s4 1983009808
    %v157 = vunpack.c.0.s8 %v156
    %v158 = vlaneseq
    %v159 = vshrl.u32 %v158, 7
    %v160 = vsub.s32 %v157, %v159
    %v161 = vrot.slane %v147, %v160
    %v162 = vcombine.high %v154, %v154
    %v163 = vcombine.high %v161, %v161
    %v172 = vsel %vm96, %v137, 0.0
    %v173 = vsel %vm96, %v145, 0.0
    %v174 = vadd.f32 %v172, %v173
    %v175 = vsel %vm96, %v144, 0.0
    %v176 = vadd.f32 %v174, %v175
    %v177 = vsel %vm96, %v146, 0.0
    %v178 = vadd.f32 %v176, %v177
    %v179 = vsel %vm96, %v154, 0.0
    %v180 = vadd.f32 %v178, %v179
    %v181 = vsel %vm96, %v162, 0.0
    %v182 = vadd.f32 %v180, %v181
    %v183 = vsel %vm96, %v161, 0.0
    %v184 = vadd.f32 %v182, %v183
    %v185 = vsel %vm96, %v163, 0.0
    %v186 = vadd.f32 %v184, %v185
    %187 = vadd.xlane.f32.xlu0 %v186
    %v188 = vpop.xlane.xlu0 %187
    %v189 = vmul.f32 %v188, 0.0009775171
    %v190 = vrsqrt.pop %v189
    %v191 = vmul.f32 %v189, %v190
    %vm192 = vcmp.eq.f32.partialorder %v189, inf
    %v193 = vsel %vm192, %v189, %v191
    %vm194 = vcmp.eq.f32.partialorder %v189, 0.0
    %v195 = vand.u32 %v189, 2147483648
    %v196 = vsel %vm194, %v195, %v193
    %v197 = vadd.f32 %v196, 1e-05
    %v198 = vrcp.pop %v197
    %v201 = vunpack.c.l.s4 269488144
    %v202 = vunpack.c.0.s8 %v201
    %v203 = vlaneseq
    %v204 = vshrl.u32 %v203, 7
    %v205 = vsub.s32 %v202, %v204
    %v206 = vrot.slane %v198, %v205
    %v208 = vmul.f32 %v124, %v206
    %v209 = vmul.f32 %v125, %v206
    %v210 = vld [vmem:[#allocation5] sm:$0xff]
    %v212 = vlaneseq
    %v213 = vshrl.u32 %v212, 7
    %v214 = vsub.s32 0, %v213
    %v215 = vrot.slane %v210, %v214
    %v216 = vlaneseq
    %v217 = vshrl.u32 %v216, 7
    %v218 = vsub.s32 1, %v217
    %v219 = vrot.slane %v210, %v218
    %v220 = vlaneseq
    %v221 = vshrl.u32 %v220, 7
    %v222 = vsub.s32 2, %v221
    %v223 = vrot.slane %v210, %v222
    %v224 = vlaneseq
    %v225 = vshrl.u32 %v224, 7
    %v226 = vsub.s32 3, %v225
    %v227 = vrot.slane %v210, %v226
    %v228 = vlaneseq
    %v229 = vshrl.u32 %v228, 7
    %v230 = vsub.s32 4, %v229
    %v231 = vrot.slane %v210, %v230
    %v232 = vlaneseq
    %v233 = vshrl.u32 %v232, 7
    %v234 = vsub.s32 5, %v233
    %v235 = vrot.slane %v210, %v234
    %v236 = vlaneseq
    %v237 = vshrl.u32 %v236, 7
    %v238 = vsub.s32 6, %v237
    %v239 = vrot.slane %v210, %v238
    %v240 = vlaneseq
    %v241 = vshrl.u32 %v240, 7
    %v242 = vsub.s32 7, %v241
    %v243 = vrot.slane %v210, %v242
    %v254 = vcombine.high %v208, %v208
    %v256 = vunpack.c.l.s4 1983009808
    %v257 = vunpack.c.0.s8 %v256
    %v258 = vlaneseq
    %v259 = vshrl.u32 %v258, 7
    %v260 = vsub.s32 %v257, %v259
    %v261 = vrot.slane %v208, %v260
    %v263 = vunpack.c.l.s4 1983009808
    %v264 = vunpack.c.0.s8 %v263
    %v265 = vlaneseq
    %v266 = vshrl.u32 %v265, 7
    %v267 = vsub.s32 %v264, %v266
    %v268 = vrot.slane %v254, %v267
    %v269 = vcombine.high %v261, %v261
    %v270 = vcombine.high %v268, %v268
    %v271 = vcombine.high %v209, %v209
    %v273 = vunpack.c.l.s4 1983009808
    %v274 = vunpack.c.0.s8 %v273
    %v275 = vlaneseq
    %v276 = vshrl.u32 %v275, 7
    %v277 = vsub.s32 %v274, %v276
    %v278 = vrot.slane %v209, %v277
    %v280 = vunpack.c.l.s4 1983009808
    %v281 = vunpack.c.0.s8 %v280
    %v282 = vlaneseq
    %v283 = vshrl.u32 %v282, 7
    %v284 = vsub.s32 %v281, %v283
    %v285 = vrot.slane %v271, %v284
    %v286 = vcombine.high %v278, %v278
    %v287 = vcombine.high %v285, %v285
    %v296 = vmul.f32 %v215, %v261
    %v297 = vmul.f32 %v219, %v269
    %v298 = vmul.f32 %v223, %v268
    %v299 = vmul.f32 %v227, %v270
    %v300 = vmul.f32 %v231, %v278
    %v301 = vmul.f32 %v235, %v286
    %v302 = vmul.f32 %v239, %v285
    %v303 = vmul.f32 %v243, %v287
    %v304 = vld [vmem:[#allocation7] sm:$0xff]
    %v306 = vlaneseq
    %v307 = vshrl.u32 %v306, 7
    %v308 = vsub.s32 0, %v307
    %v309 = vrot.slane %v304, %v308
    %v310 = vlaneseq
    %v311 = vshrl.u32 %v310, 7
    %v312 = vsub.s32 1, %v311
    %v313 = vrot.slane %v304, %v312
    %v314 = vlaneseq
    %v315 = vshrl.u32 %v314, 7
    %v316 = vsub.s32 2, %v315
    %v317 = vrot.slane %v304, %v316
    %v318 = vlaneseq
    %v319 = vshrl.u32 %v318, 7
    %v320 = vsub.s32 3, %v319
    %v321 = vrot.slane %v304, %v320
    %v322 = vlaneseq
    %v323 = vshrl.u32 %v322, 7
    %v324 = vsub.s32 4, %v323
    %v325 = vrot.slane %v304, %v324
    %v326 = vlaneseq
    %v327 = vshrl.u32 %v326, 7
    %v328 = vsub.s32 5, %v327
    %v329 = vrot.slane %v304, %v328
    %v330 = vlaneseq
    %v331 = vshrl.u32 %v330, 7
    %v332 = vsub.s32 6, %v331
    %v333 = vrot.slane %v304, %v332
    %v334 = vlaneseq
    %v335 = vshrl.u32 %v334, 7
    %v336 = vsub.s32 7, %v335
    %v337 = vrot.slane %v304, %v336
    %v346 = vadd.f32 %v296, %v309
    %v347 = vadd.f32 %v297, %v313
    %v348 = vadd.f32 %v298, %v317
    %v349 = vadd.f32 %v299, %v321
    %v350 = vadd.f32 %v300, %v325
    %v351 = vadd.f32 %v301, %v329
    %v352 = vadd.f32 %v302, %v333
    %v353 = vadd.f32 %v303, %v337
    %v362 = vcombine.low %v346, %v347
    %v363 = vcombine.low %v348, %v349
    %v365 = vunpack.c.l.s4 1983009808
    %v366 = vunpack.c.0.s8 %v365
    %v367 = vlaneseq
    %v368 = vshrl.u32 %v367, 7
    %v369 = vsub.s32 %v366, %v368
    %v370 = vrot.slane %v362, %v369
    %v372 = vunpack.c.l.s4 1983009808
    %v373 = vunpack.c.0.s8 %v372
    %v374 = vlaneseq
    %v375 = vshrl.u32 %v374, 7
    %v376 = vsub.s32 %v373, %v375
    %v377 = vrot.slane %v363, %v376
    %v378 = vcombine.low %v370, %v377
    %v379 = vcombine.low %v350, %v351
    %v380 = vcombine.low %v352, %v353
    %v382 = vunpack.c.l.s4 1983009808
    %v383 = vunpack.c.0.s8 %v382
    %v384 = vlaneseq
    %v385 = vshrl.u32 %v384, 7
    %v386 = vsub.s32 %v383, %v385
    %v387 = vrot.slane %v379, %v386
    %v389 = vunpack.c.l.s4 1983009808
    %v390 = vunpack.c.0.s8 %v389
    %v391 = vlaneseq
    %v392 = vshrl.u32 %v391, 7
    %v393 = vsub.s32 %v390, %v392
    %v394 = vrot.slane %v380, %v393
    %v395 = vcombine.low %v387, %v394
    %398 = vst [vmem:[#allocation8] sm:$0xff] %v378
    %399 = vst [vmem:[#allocation8 + $0x8] sm:$0xff] %v395
    // Predicated region
    $region26: #{tpu_custom_call.1} parent=1 // pred_check
      _
    $region27: #{tpu_custom_call.1} parent=1 // pred_check_branch
      %401 = sbr.rel (0) target = $region29
    $region28: #{tpu_custom_call.1} parent=1 // pred_region
      %s403 = ssub.s32 256, 256
      %404 = vsyncadd [#allocation4], %s403
      %s406 = sshll.u32 [#allocation8], 4
      %s407 = int_to_ptr.vmem [resolvable:$true] %s406
      %409 = dma.vmem_to_hbm [thread:$0]  %s407, 256, %s3, [#allocation4]
    $region29: #{tpu_custom_call.1} parent=1 // pred_fallthru
      _
    // Predicated region
    $region30: #{tpu_custom_call.1} parent=1 // pred_check
      _
    $region31: #{tpu_custom_call.1} parent=1 // pred_check_branch
      %411 = sbr.rel (0) target = $region33
    $region32: #{tpu_custom_call.1} parent=1 // pred_region
      %412 = dma.done [#allocation4], 256
    $region33: #{tpu_custom_call.1} parent=1 // pred_fallthru
      _
    %413 = vsyncpa [#allocation3], 1
    %414 = vsyncpa [#allocation6], 1
    %415 = vsyncpa [#allocation4], 1

</llo_original>
